<compile_context>
chip_gen: v7x
topology: tpu7x:2x2x1
jax: 0.10.0
libtpu: 0.0.40
codegen_flags: <defaults>
</compile_context>

<pallas_src>
import functools

import jax
import jax.numpy as jnp
from jax.experimental import pallas as pl
from jax.experimental.pallas import tpu as pltpu


def dueling_q_kernel(x_ref, w1_ref, w2_ref, w3_ref, wq_ref, q_ref):
    """One batch tile: 3x (matmul+relu) then the fused dueling-head matmul."""
    h = x_ref[...]
    h = jnp.maximum(jnp.dot(h, w1_ref[...], preferred_element_type=jnp.float32), 0.0)
    h = jnp.maximum(jnp.dot(h, w2_ref[...], preferred_element_type=jnp.float32), 0.0)
    h = jnp.maximum(jnp.dot(h, w3_ref[...], preferred_element_type=jnp.float32), 0.0)
    q_ref[...] = jnp.dot(
        h, wq_ref[...], preferred_element_type=jnp.float32
    ).astype(q_ref.dtype)


# ----------------------------------------------------------------------------
# Parameter construction / packing
# ----------------------------------------------------------------------------
def init_params(key, state_size, action_size,
                fc1_units=128, fc2_units=64, fc3_units=64):
    """Mimics nn.Linear's U(-1/sqrt(fan_in), 1/sqrt(fan_in)) init.

    Weights stored as (in, out) so forward is x @ W + b.
    """
    dims = [(state_size, fc1_units), (fc1_units, fc2_units),
            (fc2_units, fc3_units), (fc3_units, action_size), (fc3_units, 1)]
    names = ["1", "2", "3", "a", "v"]
    params = {}
    keys = jax.random.split(key, 2 * len(dims))
    for i, ((fan_in, fan_out), name) in enumerate(zip(dims, names)):
        bound = 1.0 / jnp.sqrt(float(fan_in))
        params[f"w{name}"] = jax.random.uniform(
            keys[2 * i], (fan_in, fan_out), jnp.float32, -bound, bound)
        params[f"b{name}"] = jax.random.uniform(
            keys[2 * i + 1], (1, fan_out), jnp.float32, -bound, bound)
    return params


def _augment(w, b, add_const_col):
    """Stack bias as an extra input row; optionally append a column that
    regenerates the constant-1 feature for the next layer (relu(1) == 1)."""
    fan_in, fan_out = w.shape
    wa = jnp.concatenate([w, b.reshape(1, fan_out)], axis=0)      # (in+1, out)
    if add_const_col:
        col = jnp.zeros((fan_in + 1, 1), w.dtype).at[fan_in, 0].set(1.0)
        wa = jnp.concatenate([wa, col], axis=1)                   # (in+1, out+1)
    return wa


def pack_params(params):
    """Fuse the dueling heads and fold every bias into its weight matrix."""
    wa, ba = params["wa"], params["ba"]
    wv, bv = params["wv"], params["bv"]
    # q = val + adv - mean_a(adv)  ==  h @ wq + bq   (exact identity)
    wq = (wa - jnp.mean(wa, axis=1, keepdims=True)) + wv          # (fc3, A)
    bq = (ba - jnp.mean(ba, axis=1, keepdims=True)) + bv          # (1, A)
    return {
        "w1": _augment(params["w1"], params["b1"], add_const_col=True),
        "w2": _augment(params["w2"], params["b2"], add_const_col=True),
        "w3": _augment(params["w3"], params["b3"], add_const_col=True),
        "wq": _augment(wq, bq, add_const_col=False),
    }


# ----------------------------------------------------------------------------
# Forward wrapper
# ----------------------------------------------------------------------------
def _round_up(n, m):
    return ((n + m - 1) // m) * m


@functools.partial(jax.jit, static_argnames=("block_b",))
def dueling_q_forward(x, packed, block_b=128):
    """x: (B, state_size) f32; packed: output of pack_params."""
    B = x.shape[0]
    w1, w2, w3, wq = packed["w1"], packed["w2"], packed["w3"], packed["wq"]
    s_aug = w1.shape[0]                     # state_size + 1
    action_size = wq.shape[1]

    # Augmented input: the constant-1 column carries the biases through the net.
    x_aug = jnp.concatenate(
        [x.astype(jnp.float32), jnp.ones((B, 1), jnp.float32)], axis=1)

    # Batch tile: multiple of 8 sublanes, up to block_b; pad batch to fit.
    tb = min(block_b, _round_up(B, 8))
    bp = _round_up(B, tb)
    if bp != B:
        x_aug = jnp.pad(x_aug, ((0, bp - B), (0, 0)))  # padded rows -> q rows of 0

    def weight_spec(a):
        # Full-array block, same block index every step -> stays VMEM-resident.
        return pl.BlockSpec(a.shape, lambda i: (0, 0))

    q_pad = pl.pallas_call(
        dueling_q_kernel,
        out_shape=jax.ShapeDtypeStruct((bp, action_size), jnp.float32),
        grid=(bp // tb,),
        in_specs=[
            pl.BlockSpec((tb, s_aug), lambda i: (i, 0)),   # streamed batch tile
            weight_spec(w1),
            weight_spec(w2),
            weight_spec(w3),
            weight_spec(wq),
        ],
        out_specs=pl.BlockSpec((tb, action_size), lambda i: (i, 0)),
        compiler_params=pltpu.CompilerParams(
            dimension_semantics=("parallel",)),
    )(x_aug, w1, w2, w3, wq)

    return q_pad[:B]


# ----------------------------------------------------------------------------
# Pure-JAX reference (unfused, matches the PyTorch module semantics)
# ----------------------------------------------------------------------------
def reference_forward(x, params):
    h = jax.nn.relu(x @ params["w1"] + params["b1"])
    h = jax.nn.relu(h @ params["w2"] + params["b2"])
    h = jax.nn.relu(h @ params["w3"] + params["b3"])
    adv = h @ params["wa"] + params["ba"]
    val = h @ params["wv"] + params["bv"]
    return val + (adv - adv.mean(axis=1, keepdims=True))


if __name__ == "__main__":
    state_size = 8
    action_size = 4
    batch = 2

    key = jax.random.PRNGKey(0)
    pkey, xkey = jax.random.split(key)
    params = init_params(pkey, state_size, action_size)
    packed = pack_params(params)
    x = jax.random.normal(xkey, (batch, state_size), jnp.float32)

    q = dueling_q_forward(x, packed)
    q = jax.block_until_ready(q)

    q_ref = reference_forward(x, params)
    assert q.shape == (batch, action_size)
    assert jnp.allclose(q, q_ref, atol=1e-5, rtol=1e-5), "mismatch vs reference"

    print("KERNEL_OK")
</pallas_src>

<mosaic_0001>
module attributes {stable_mosaic.version = 11 : i64} {
  func.func @dueling_q_kernel(%arg0: i32, %arg1: memref<8x9xf32, #tpu.memory_space<vmem>>, %arg2: memref<9x129xf32, #tpu.memory_space<vmem>>, %arg3: memref<129x65xf32, #tpu.memory_space<vmem>>, %arg4: memref<65x65xf32, #tpu.memory_space<vmem>>, %arg5: memref<65x4xf32, #tpu.memory_space<vmem>>, %arg6: memref<8x4xf32, #tpu.memory_space<vmem>>) attributes {dimension_semantics = [#tpu.dimension_semantics<parallel>], iteration_bounds = array<i64: 1>, scalar_prefetch = 0 : i64, scratch_operands = 0 : i64, tpu.core_type = #tpu.core_type<tc>, window_params = [{transform_indices = @transform_0, window_bounds = array<i64: 8, 9>}, {pipeline_mode = #tpu.pipeline_mode<synchronous>, transform_indices = @transform_1, window_bounds = array<i64: 9, 129>}, {pipeline_mode = #tpu.pipeline_mode<synchronous>, transform_indices = @transform_2, window_bounds = array<i64: 129, 65>}, {pipeline_mode = #tpu.pipeline_mode<synchronous>, transform_indices = @transform_3, window_bounds = array<i64: 65, 65>}, {pipeline_mode = #tpu.pipeline_mode<synchronous>, transform_indices = @transform_4, window_bounds = array<i64: 65, 4>}, {transform_indices = @transform_5, window_bounds = array<i64: 8, 4>}]} {
    %c0 = arith.constant 0 : index
    %c0_0 = arith.constant 0 : index
    %0 = vector.load %arg1[%c0, %c0_0] : memref<8x9xf32, #tpu.memory_space<vmem>>, vector<8x9xf32>
    %c0_1 = arith.constant 0 : index
    %c0_2 = arith.constant 0 : index
    %1 = vector.load %arg2[%c0_1, %c0_2] : memref<9x129xf32, #tpu.memory_space<vmem>>, vector<9x129xf32>
    %cst = arith.constant dense<0.000000e+00> : vector<8x129xf32>
    %2 = tpu.matmul %0, %1, %cst {dimension_numbers = #tpu.dot_dimension_numbers<[1], [0], [0], [1], [0, 0, 1, 1], [], []>} : vector<8x9xf32>, vector<9x129xf32>, vector<8x129xf32> -> vector<8x129xf32>
    %cst_3 = arith.constant 0.000000e+00 : f32
    %3 = vector.broadcast %cst_3 : f32 to vector<8x129xf32>
    %4 = arith.maximumf %2, %3 : vector<8x129xf32>
    %c0_4 = arith.constant 0 : index
    %c0_5 = arith.constant 0 : index
    %5 = vector.load %arg3[%c0_4, %c0_5] : memref<129x65xf32, #tpu.memory_space<vmem>>, vector<129x65xf32>
    %cst_6 = arith.constant dense<0.000000e+00> : vector<8x65xf32>
    %6 = tpu.matmul %4, %5, %cst_6 {dimension_numbers = #tpu.dot_dimension_numbers<[1], [0], [0], [1], [0, 0, 1, 1], [], []>} : vector<8x129xf32>, vector<129x65xf32>, vector<8x65xf32> -> vector<8x65xf32>
    %cst_7 = arith.constant 0.000000e+00 : f32
    %7 = vector.broadcast %cst_7 : f32 to vector<8x65xf32>
    %8 = arith.maximumf %6, %7 : vector<8x65xf32>
    %c0_8 = arith.constant 0 : index
    %c0_9 = arith.constant 0 : index
    %9 = vector.load %arg4[%c0_8, %c0_9] : memref<65x65xf32, #tpu.memory_space<vmem>>, vector<65x65xf32>
    %cst_10 = arith.constant dense<0.000000e+00> : vector<8x65xf32>
    %10 = tpu.matmul %8, %9, %cst_10 {dimension_numbers = #tpu.dot_dimension_numbers<[1], [0], [0], [1], [0, 0, 1, 1], [], []>} : vector<8x65xf32>, vector<65x65xf32>, vector<8x65xf32> -> vector<8x65xf32>
    %cst_11 = arith.constant 0.000000e+00 : f32
    %11 = vector.broadcast %cst_11 : f32 to vector<8x65xf32>
    %12 = arith.maximumf %10, %11 : vector<8x65xf32>
    %c0_12 = arith.constant 0 : index
    %c0_13 = arith.constant 0 : index
    %13 = vector.load %arg5[%c0_12, %c0_13] : memref<65x4xf32, #tpu.memory_space<vmem>>, vector<65x4xf32>
    %cst_14 = arith.constant dense<0.000000e+00> : vector<8x4xf32>
    %14 = tpu.matmul %12, %13, %cst_14 {dimension_numbers = #tpu.dot_dimension_numbers<[1], [0], [0], [1], [0, 0, 1, 1], [], []>} : vector<8x65xf32>, vector<65x4xf32>, vector<8x4xf32> -> vector<8x4xf32>
    %c0_15 = arith.constant 0 : index
    %c0_16 = arith.constant 0 : index
    %15 = vector.load %arg6[%c0_15, %c0_16] : memref<8x4xf32, #tpu.memory_space<vmem>>, vector<8x4xf32>
    tpu.vector_store %arg6[%c0_15, %c0_16], %14 {strides = array<i32>} : memref<8x4xf32, #tpu.memory_space<vmem>>, vector<8x4xf32>,
    return
  }
  func.func @transform_0(%arg0: i32) -> (i32, i32) {
    %c0_i32 = arith.constant 0 : i32
    %c0_i32_0 = arith.constant 0 : i32
    return %arg0, %c0_i32 : i32, i32
  }
  func.func @transform_1(%arg0: i32) -> (i32, i32) {
    %c0_i32 = arith.constant 0 : i32
    %c0_i32_0 = arith.constant 0 : i32
    %c0_i32_1 = arith.constant 0 : i32
    return %c0_i32, %c0_i32_0 : i32, i32
  }
  func.func @transform_2(%arg0: i32) -> (i32, i32) {
    %c0_i32 = arith.constant 0 : i32
    %c0_i32_0 = arith.constant 0 : i32
    %c0_i32_1 = arith.constant 0 : i32
    return %c0_i32, %c0_i32_0 : i32, i32
  }
  func.func @transform_3(%arg0: i32) -> (i32, i32) {
    %c0_i32 = arith.constant 0 : i32
    %c0_i32_0 = arith.constant 0 : i32
    %c0_i32_1 = arith.constant 0 : i32
    return %c0_i32, %c0_i32_0 : i32, i32
  }
  func.func @transform_4(%arg0: i32) -> (i32, i32) {
    %c0_i32 = arith.constant 0 : i32
    %c0_i32_0 = arith.constant 0 : i32
    %c0_i32_1 = arith.constant 0 : i32
    return %c0_i32, %c0_i32_0 : i32, i32
  }
  func.func @transform_5(%arg0: i32) -> (i32, i32) {
    %c0_i32 = arith.constant 0 : i32
    %c0_i32_0 = arith.constant 0 : i32
    return %arg0, %c0_i32 : i32, i32
  }
}

</mosaic_0001>

<llo_original>
// kernel: dueling_q_forward.1
$region0: #{dueling_q_forward.1}
  #allocation0 [shape = 'u32[]', space=smem, size = 0x4, offset = 0x4, fixed_abs, tag = 'smem constant byte address 0x4 - core index']
  #allocation1 [shape = 'u32[144,128]{1,0:T(1,128)}', space=vmem, size = 0x12000, scoped, tag = 'internal scratch']
  %s0 = inlined_call_operand.vmem [shape: f32[8,9], index: 0, kind: input, shape index: {}]
  %s1 = inlined_call_operand.hbm [shape: f32[9,129], index: 1, kind: input, shape index: {}]
  %s2 = inlined_call_operand.hbm [shape: f32[129,65], index: 2, kind: input, shape index: {}]
  %s3 = inlined_call_operand.vmem [shape: f32[65,65], index: 3, kind: input, shape index: {}]
  %s4 = inlined_call_operand.vmem [shape: f32[65,4], index: 4, kind: input, shape index: {}]
  %s5 = inlined_call_operand.vmem [shape: f32[8,4], index: 5, kind: output, shape index: {}]
  %s6 = sld [smem:[#allocation0]]
  $region38: #{dueling_q_forward.1} parent=0
    _
  %s8 = ssub.s32 1, %s6
  %s9 = scalar_select 0, %s8, %s6
  $region1: #{dueling_q_forward.1} parent=0
    #allocation2 [shape = 'u8[16384]{0}', space=vmem, size = 0x4000, scoped, tag = 'input window, operand 1, single buffered']
    #allocation3 [shape = 's32[1]{0}', space=sflag, size = 0x4, scoped, tag = 'scoped memory for dueling_q_forward.1']
    #allocation4 [shape = 'u8[69632]{0}', space=vmem, size = 0x11000, scoped, tag = 'input window, operand 2, single buffered']
    #allocation5 [shape = 's32[1]{0}', space=sflag, size = 0x4, scoped, tag = 'scoped memory for dueling_q_forward.1']
    %10 = vsyncpa [#allocation3], 0
    %11 = vsyncpa [#allocation5], 0
    // Predicated region
    $region2: #{dueling_q_forward.1} parent=1 // pred_check
      _
    $region3: #{dueling_q_forward.1} parent=1 // pred_check_branch
      %13 = sbr.rel (0) target = $region5
    $region4: #{dueling_q_forward.1} parent=1 // pred_region
      _
    $region5: #{dueling_q_forward.1} parent=1 // pred_fallthru
      _
    // Predicated region
    $region6: #{dueling_q_forward.1} parent=1 // pred_check
      _
    $region7: #{dueling_q_forward.1} parent=1 // pred_check_branch
      %15 = sbr.rel (0) target = $region9
    $region8: #{dueling_q_forward.1} parent=1 // pred_region
      %s17 = ssub.s32 512, 512
      %18 = vsyncadd [#allocation3], %s17
      %s19 = sshll.u32 [#allocation2], 4
      %s20 = int_to_ptr.vmem [resolvable:$true] %s19
      %25 = dma.hbm_to_vmem [thread:$0]  %s1, 512, %s20, [#allocation3], 256, 256, 16
    $region9: #{dueling_q_forward.1} parent=1 // pred_fallthru
      _
    // Predicated region
    $region10: #{dueling_q_forward.1} parent=1 // pred_check
      _
    $region11: #{dueling_q_forward.1} parent=1 // pred_check_branch
      %27 = sbr.rel (0) target = $region13
    $region12: #{dueling_q_forward.1} parent=1 // pred_region
      %s29 = ssub.s32 2176, 2176
      %30 = vsyncadd [#allocation5], %s29
      %s31 = sshll.u32 [#allocation4], 4
      %s32 = int_to_ptr.vmem [resolvable:$true] %s31
      %37 = dma.hbm_to_vmem [thread:$0]  %s2, 2176, %s32, [#allocation5], 128, 128, 8
    $region13: #{dueling_q_forward.1} parent=1 // pred_fallthru
      _
    // Predicated region
    $region14: #{dueling_q_forward.1} parent=1 // pred_check
      _
    $region15: #{dueling_q_forward.1} parent=1 // pred_check_branch
      %39 = sbr.rel (0) target = $region17
    $region16: #{dueling_q_forward.1} parent=1 // pred_region
      _
    $region17: #{dueling_q_forward.1} parent=1 // pred_fallthru
      _
    // Predicated region
    $region18: #{dueling_q_forward.1} parent=1 // pred_check
      _
    $region19: #{dueling_q_forward.1} parent=1 // pred_check_branch
      %41 = sbr.rel (0) target = $region21
    $region20: #{dueling_q_forward.1} parent=1 // pred_region
      _
    $region21: #{dueling_q_forward.1} parent=1 // pred_fallthru
      _
    // Predicated region
    $region22: #{dueling_q_forward.1} parent=1 // pred_check
      _
    $region23: #{dueling_q_forward.1} parent=1 // pred_check_branch
      %43 = sbr.rel (0) target = $region25
    $region24: #{dueling_q_forward.1} parent=1 // pred_region
      %44 = dma.done [#allocation3], 512
    $region25: #{dueling_q_forward.1} parent=1 // pred_fallthru
      _
    // Predicated region
    $region26: #{dueling_q_forward.1} parent=1 // pred_check
      _
    $region27: #{dueling_q_forward.1} parent=1 // pred_check_branch
      %46 = sbr.rel (0) target = $region29
    $region28: #{dueling_q_forward.1} parent=1 // pred_region
      %47 = dma.done [#allocation5], 2176
    $region29: #{dueling_q_forward.1} parent=1 // pred_fallthru
      _
    %v48 = vld [vmem:[%s0] sm:$0xff]
    %v49 = vld [vmem:[#allocation2] sm:$0xff]
    %v50 = vld [vmem:[#allocation2 + $0x8] sm:$0xff]
    %v51 = vld [vmem:[#allocation2 + $0x10] sm:$0x1]
    %v52 = vld [vmem:[#allocation2 + $0x18] sm:$0x1]
    %vm53 = vcmask 72704
    %v55 = vsel %vm53, %v48, 0
    %vm57 = vcmask 1040384
    %v59 = vsel %vm57, %v51, 0
    %v62 = vsel %vm57, %v52, 0
    %64 = vmatprep.subr.mxu0 %v50
    %65 = vmatpush1.msra.mxu0 %v49
    %66 = vmatprep.subr.mxu0 %v62
    %67 = vmatpush1.msra.mxu0 %v59
    %68 = vmatprep.subr.mxu0 0.0
    %69 = vmatpush1.msra.mxu0 0.0
    %70 = vmatprep.subr.mxu0 0.0
    %71 = vmatpush1.msra.mxu0 0.0
    %72 = vmatprep.subr.mxu0 0.0
    %73 = vmatpush1.msra.mxu0 0.0
    %74 = vmatprep.subr.mxu0 0.0
    %75 = vmatpush1.msra.mxu0 0.0
    %76 = vmatprep.subr.mxu0 0.0
    %77 = vmatpush1.msra.mxu0 0.0
    %78 = vmatprep.subr.mxu0 0.0
    %79 = vmatpush1.msra.mxu0 0.0
    %80 = vmatprep.subr.mxu0 0.0
    %81 = vmatpush1.msra.mxu0 0.0
    %82 = vmatprep.subr.mxu0 0.0
    %83 = vmatpush1.msra.mxu0 0.0
    %84 = vmatprep.subr.mxu0 0.0
    %85 = vmatpush1.msra.mxu0 0.0
    %86 = vmatprep.subr.mxu0 0.0
    %87 = vmatpush1.msra.mxu0 0.0
    %88 = vmatprep.subr.mxu0 0.0
    %89 = vmatpush1.msra.mxu0 0.0
    %90 = vmatprep.subr.mxu0 0.0
    %91 = vmatpush1.msra.mxu0 0.0
    %92 = vmatprep.subr.mxu0 0.0
    %93 = vmatpush1.msra.mxu0 0.0
    %94 = vmatprep.subr.mxu0 0.0
    %95 = vmatpush1.msra.mxu0 0.0
    %96 = vmatprep.subr.mxu0 0.0
    %97 = vmatpush1.msra.mxu0 0.0
    %98 = vmatprep.subr.mxu0 0.0
    %99 = vmatpush1.msra.mxu0 0.0
    %100 = vmatprep.subr.mxu0 0.0
    %101 = vmatpush1.msra.mxu0 0.0
    %102 = vmatprep.subr.mxu0 0.0
    %103 = vmatpush1.msra.mxu0 0.0
    %104 = vmatprep.subr.mxu0 0.0
    %105 = vmatpush1.msra.mxu0 0.0
    %106 = vmatprep.subr.mxu0 0.0
    %107 = vmatpush1.msra.mxu0 0.0
    %108 = vmatprep.subr.mxu0 0.0
    %109 = vmatpush1.msra.mxu0 0.0
    %110 = vmatprep.subr.mxu0 0.0
    %111 = vmatpush1.msra.mxu0 0.0
    %112 = vmatprep.subr.mxu0 0.0
    %113 = vmatpush1.msra.mxu0 0.0
    %114 = vmatprep.subr.mxu0 0.0
    %115 = vmatpush1.msra.mxu0 0.0
    %116 = vmatprep.subr.mxu0 0.0
    %117 = vmatpush1.msra.mxu0 0.0
    %118 = vmatprep.subr.mxu0 0.0
    %119 = vmatpush1.msra.mxu0 0.0
    %120 = vmatprep.subr.mxu0 0.0
    %121 = vmatpush1.msra.mxu0 0.0
    %122 = vmatprep.subr.mxu0 0.0
    %123 = vmatpush1.msra.mxu0 0.0
    %124 = vmatprep.subr.mxu0 0.0
    %125 = vmatpush1.msra.mxu0 0.0
    %126 = vmatprep.subr.mxu0 0.0
    %127 = vmatpush1.msra.mxu0 0.0
    %128 = vmatprep.mubr.f32.mxu0 0.0
    %129 = vmatmul.mubr.f32.gmra.mrb[0].mxu0 %v55
    %v130 = vpop.f32.mrb[0].mxu0
    %v131 = vadd.f32 0.0, %v130
    %v132 = vpop.f32.mrb[0].mxu0
    %v133 = vadd.f32 0.0, %v132
    %134 = vdwg.mxu0
    %v135 = vmax.f32 %v131, 0.0
    %v136 = vmax.f32 %v133, 0.0
    %v137 = vld [vmem:[#allocation4] sm:$0xff]
    %v138 = vld [vmem:[#allocation4 + $0x8] sm:$0xff]
    %v139 = vld [vmem:[#allocation4 + $0x10] sm:$0xff]
    %v140 = vld [vmem:[#allocation4 + $0x18] sm:$0xff]
    %v141 = vld [vmem:[#allocation4 + $0x20] sm:$0xff]
    %v142 = vld [vmem:[#allocation4 + $0x28] sm:$0xff]
    %v143 = vld [vmem:[#allocation4 + $0x30] sm:$0xff]
    %v144 = vld [vmem:[#allocation4 + $0x38] sm:$0xff]
    %v145 = vld [vmem:[#allocation4 + $0x40] sm:$0xff]
    %v146 = vld [vmem:[#allocation4 + $0x48] sm:$0xff]
    %v147 = vld [vmem:[#allocation4 + $0x50] sm:$0xff]
    %v148 = vld [vmem:[#allocation4 + $0x58] sm:$0xff]
    %v149 = vld [vmem:[#allocation4 + $0x60] sm:$0xff]
    %v150 = vld [vmem:[#allocation4 + $0x68] sm:$0xff]
    %v151 = vld [vmem:[#allocation4 + $0x70] sm:$0xff]
    %v152 = vld [vmem:[#allocation4 + $0x78] sm:$0xff]
    %v153 = vld [vmem:[#allocation4 + $0x80] sm:$0x1]
    %vm154 = vcmask 7168
    %v156 = vsel %vm154, %v136, 0
    %v159 = vsel %vm57, %v153, 0
    %161 = vmatprep.subr.mxu0 0.0
    %162 = vmatpush1.msra.mxu0 %v137
    %163 = vmatprep.subr.mxu0 0.0
    %164 = vmatpush1.msra.mxu0 %v138
    %165 = vmatprep.subr.mxu0 0.0
    %166 = vmatpush1.msra.mxu0 %v139
    %167 = vmatprep.subr.mxu0 0.0
    %168 = vmatpush1.msra.mxu0 %v140
    %169 = vmatprep.subr.mxu0 0.0
    %170 = vmatpush1.msra.mxu0 %v141
    %171 = vmatprep.subr.mxu0 0.0
    %172 = vmatpush1.msra.mxu0 %v142
    %173 = vmatprep.subr.mxu0 0.0
    %174 = vmatpush1.msra.mxu0 %v143
    %175 = vmatprep.subr.mxu0 0.0
    %176 = vmatpush1.msra.mxu0 %v144
    %177 = vmatprep.subr.mxu0 0.0
    %178 = vmatpush1.msra.mxu0 %v145
    %179 = vmatprep.subr.mxu0 0.0
    %180 = vmatpush1.msra.mxu0 %v146
    %181 = vmatprep.subr.mxu0 0.0
    %182 = vmatpush1.msra.mxu0 %v147
    %183 = vmatprep.subr.mxu0 0.0
    %184 = vmatpush1.msra.mxu0 %v148
    %185 = vmatprep.subr.mxu0 0.0
    %186 = vmatpush1.msra.mxu0 %v149
    %187 = vmatprep.subr.mxu0 0.0
    %188 = vmatpush1.msra.mxu0 %v150
    %189 = vmatprep.subr.mxu0 0.0
    %190 = vmatpush1.msra.mxu0 %v151
    %191 = vmatprep.subr.mxu0 0.0
    %192 = vmatpush1.msra.mxu0 %v152
    %193 = vmatprep.subr.mxu0 0.0
    %194 = vmatpush1.msra.mxu0 %v159
    %195 = vmatprep.subr.mxu0 0.0
    %196 = vmatpush1.msra.mxu0 0.0
    %197 = vmatprep.subr.mxu0 0.0
    %198 = vmatpush1.msra.mxu0 0.0
    %199 = vmatprep.subr.mxu0 0.0
    %200 = vmatpush1.msra.mxu0 0.0
    %201 = vmatprep.subr.mxu0 0.0
    %202 = vmatpush1.msra.mxu0 0.0
    %203 = vmatprep.subr.mxu0 0.0
    %204 = vmatpush1.msra.mxu0 0.0
    %205 = vmatprep.subr.mxu0 0.0
    %206 = vmatpush1.msra.mxu0 0.0
    %207 = vmatprep.subr.mxu0 0.0
    %208 = vmatpush1.msra.mxu0 0.0
    %209 = vmatprep.subr.mxu0 0.0
    %210 = vmatpush1.msra.mxu0 0.0
    %211 = vmatprep.subr.mxu0 0.0
    %212 = vmatpush1.msra.mxu0 0.0
    %213 = vmatprep.subr.mxu0 0.0
    %214 = vmatpush1.msra.mxu0 0.0
    %215 = vmatprep.subr.mxu0 0.0
    %216 = vmatpush1.msra.mxu0 0.0
    %217 = vmatprep.subr.mxu0 0.0
    %218 = vmatpush1.msra.mxu0 0.0
    %219 = vmatprep.subr.mxu0 0.0
    %220 = vmatpush1.msra.mxu0 0.0
    %221 = vmatprep.subr.mxu0 0.0
    %222 = vmatpush1.msra.mxu0 0.0
    %223 = vmatprep.subr.mxu0 0.0
    %224 = vmatpush1.msra.mxu0 0.0
    %225 = vmatprep.mubr.f32.mxu0 %v156
    %226 = vmatmul.mubr.f32.gmra.mrb[0].mxu0 %v135
    %v227 = vpop.f32.mrb[0].mxu0
    %v228 = vadd.f32 0.0, %v227
    %v229 = vpop.f32.mrb[0].mxu0
    %230 = vdwg.mxu0
    %v231 = vmax.f32 %v228, 0.0
    %v232 = vld [vmem:[%s3] sm:$0xff]
    %v233 = vld [vmem:[%s3 + $0x8] sm:$0xff]
    %v234 = vld [vmem:[%s3 + $0x10] sm:$0xff]
    %v235 = vld [vmem:[%s3 + $0x18] sm:$0xff]
    %v236 = vld [vmem:[%s3 + $0x20] sm:$0xff]
    %v237 = vld [vmem:[%s3 + $0x28] sm:$0xff]
    %v238 = vld [vmem:[%s3 + $0x30] sm:$0xff]
    %v239 = vld [vmem:[%s3 + $0x38] sm:$0xff]
    %v240 = vld [vmem:[%s3 + $0x40] sm:$0x1]
    %vm241 = vcmask 531456
    %v243 = vsel %vm241, %v231, 0
    %v246 = vsel %vm57, %v240, 0
    %248 = vmatprep.subr.mxu0 0.0
    %249 = vmatpush1.msra.mxu0 %v232
    %250 = vmatprep.subr.mxu0 0.0
    %251 = vmatpush1.msra.mxu0 %v233
    %252 = vmatprep.subr.mxu0 0.0
    %253 = vmatpush1.msra.mxu0 %v234
    %254 = vmatprep.subr.mxu0 0.0
    %255 = vmatpush1.msra.mxu0 %v235
    %256 = vmatprep.subr.mxu0 0.0
    %257 = vmatpush1.msra.mxu0 %v236
    %258 = vmatprep.subr.mxu0 0.0
    %259 = vmatpush1.msra.mxu0 %v237
    %260 = vmatprep.subr.mxu0 0.0
    %261 = vmatpush1.msra.mxu0 %v238
    %262 = vmatprep.subr.mxu0 0.0
    %263 = vmatpush1.msra.mxu0 %v239
    %264 = vmatprep.subr.mxu0 0.0
    %265 = vmatpush1.msra.mxu0 %v246
    %266 = vmatprep.subr.mxu0 0.0
    %267 = vmatpush1.msra.mxu0 0.0
    %268 = vmatprep.subr.mxu0 0.0
    %269 = vmatpush1.msra.mxu0 0.0
    %270 = vmatprep.subr.mxu0 0.0
    %271 = vmatpush1.msra.mxu0 0.0
    %272 = vmatprep.subr.mxu0 0.0
    %273 = vmatpush1.msra.mxu0 0.0
    %274 = vmatprep.subr.mxu0 0.0
    %275 = vmatpush1.msra.mxu0 0.0
    %276 = vmatprep.subr.mxu0 0.0
    %277 = vmatpush1.msra.mxu0 0.0
    %278 = vmatprep.subr.mxu0 0.0
    %279 = vmatpush1.msra.mxu0 0.0
    %280 = vmatprep.subr.mxu0 0.0
    %281 = vmatpush1.msra.mxu0 0.0
    %282 = vmatprep.subr.mxu0 0.0
    %283 = vmatpush1.msra.mxu0 0.0
    %284 = vmatprep.subr.mxu0 0.0
    %285 = vmatpush1.msra.mxu0 0.0
    %286 = vmatprep.subr.mxu0 0.0
    %287 = vmatpush1.msra.mxu0 0.0
    %288 = vmatprep.subr.mxu0 0.0
    %289 = vmatpush1.msra.mxu0 0.0
    %290 = vmatprep.subr.mxu0 0.0
    %291 = vmatpush1.msra.mxu0 0.0
    %292 = vmatprep.subr.mxu0 0.0
    %293 = vmatpush1.msra.mxu0 0.0
    %294 = vmatprep.subr.mxu0 0.0
    %295 = vmatpush1.msra.mxu0 0.0
    %296 = vmatprep.subr.mxu0 0.0
    %297 = vmatpush1.msra.mxu0 0.0
    %298 = vmatprep.subr.mxu0 0.0
    %299 = vmatpush1.msra.mxu0 0.0
    %300 = vmatprep.subr.mxu0 0.0
    %301 = vmatpush1.msra.mxu0 0.0
    %302 = vmatprep.subr.mxu0 0.0
    %303 = vmatpush1.msra.mxu0 0.0
    %304 = vmatprep.subr.mxu0 0.0
    %305 = vmatpush1.msra.mxu0 0.0
    %306 = vmatprep.subr.mxu0 0.0
    %307 = vmatpush1.msra.mxu0 0.0
    %308 = vmatprep.subr.mxu0 0.0
    %309 = vmatpush1.msra.mxu0 0.0
    %310 = vmatprep.subr.mxu0 0.0
    %311 = vmatpush1.msra.mxu0 0.0
    %312 = vmatprep.mubr.f32.mxu0 0.0
    %313 = vmatmul.mubr.f32.gmra.mrb[0].mxu0 %v243
    %v314 = vpop.f32.mrb[0].mxu0
    %v315 = vadd.f32 0.0, %v314
    %v316 = vpop.f32.mrb[0].mxu0
    %317 = vdwg.mxu0
    %v318 = vmax.f32 %v315, 0.0
    %v319 = vld [vmem:[%s4] sm:$0xff]
    %v320 = vld [vmem:[%s4 + $0x8] sm:$0xff]
    %v321 = vld [vmem:[%s4 + $0x10] sm:$0xff]
    %v322 = vld [vmem:[%s4 + $0x18] sm:$0xff]
    %v323 = vld [vmem:[%s4 + $0x20] sm:$0xff]
    %v324 = vld [vmem:[%s4 + $0x28] sm:$0xff]
    %v325 = vld [vmem:[%s4 + $0x30] sm:$0xff]
    %v326 = vld [vmem:[%s4 + $0x38] sm:$0xff]
    %v327 = vld [vmem:[%s4 + $0x40] sm:$0x1]
    %v329 = vsel %vm241, %v318, 0
    %v332 = vsel %vm57, %v327, 0
    %334 = vmatprep.subr.mxu0 0.0
    %335 = vmatpush1.msra.mxu0 %v319
    %336 = vmatprep.subr.mxu0 0.0
    %337 = vmatpush1.msra.mxu0 %v320
    %338 = vmatprep.subr.mxu0 0.0
    %339 = vmatpush1.msra.mxu0 %v321
    %340 = vmatprep.subr.mxu0 0.0
    %341 = vmatpush1.msra.mxu0 %v322
    %342 = vmatprep.subr.mxu0 0.0
    %343 = vmatpush1.msra.mxu0 %v323
    %344 = vmatprep.subr.mxu0 0.0
    %345 = vmatpush1.msra.mxu0 %v324
    %346 = vmatprep.subr.mxu0 0.0
    %347 = vmatpush1.msra.mxu0 %v325
    %348 = vmatprep.subr.mxu0 0.0
    %349 = vmatpush1.msra.mxu0 %v326
    %350 = vmatprep.subr.mxu0 0.0
    %351 = vmatpush1.msra.mxu0 %v332
    %352 = vmatprep.subr.mxu0 0.0
    %353 = vmatpush1.msra.mxu0 0.0
    %354 = vmatprep.subr.mxu0 0.0
    %355 = vmatpush1.msra.mxu0 0.0
    %356 = vmatprep.subr.mxu0 0.0
    %357 = vmatpush1.msra.mxu0 0.0
    %358 = vmatprep.subr.mxu0 0.0
    %359 = vmatpush1.msra.mxu0 0.0
    %360 = vmatprep.subr.mxu0 0.0
    %361 = vmatpush1.msra.mxu0 0.0
    %362 = vmatprep.subr.mxu0 0.0
    %363 = vmatpush1.msra.mxu0 0.0
    %364 = vmatprep.subr.mxu0 0.0
    %365 = vmatpush1.msra.mxu0 0.0
    %366 = vmatprep.subr.mxu0 0.0
    %367 = vmatpush1.msra.mxu0 0.0
    %368 = vmatprep.subr.mxu0 0.0
    %369 = vmatpush1.msra.mxu0 0.0
    %370 = vmatprep.subr.mxu0 0.0
    %371 = vmatpush1.msra.mxu0 0.0
    %372 = vmatprep.subr.mxu0 0.0
    %373 = vmatpush1.msra.mxu0 0.0
    %374 = vmatprep.subr.mxu0 0.0
    %375 = vmatpush1.msra.mxu0 0.0
    %376 = vmatprep.subr.mxu0 0.0
    %377 = vmatpush1.msra.mxu0 0.0
    %378 = vmatprep.subr.mxu0 0.0
    %379 = vmatpush1.msra.mxu0 0.0
    %380 = vmatprep.subr.mxu0 0.0
    %381 = vmatpush1.msra.mxu0 0.0
    %382 = vmatprep.subr.mxu0 0.0
    %383 = vmatpush1.msra.mxu0 0.0
    %384 = vmatprep.subr.mxu0 0.0
    %385 = vmatpush1.msra.mxu0 0.0
    %386 = vmatprep.subr.mxu0 0.0
    %387 = vmatpush1.msra.mxu0 0.0
    %388 = vmatprep.subr.mxu0 0.0
    %389 = vmatpush1.msra.mxu0 0.0
    %390 = vmatprep.subr.mxu0 0.0
    %391 = vmatpush1.msra.mxu0 0.0
    %392 = vmatprep.subr.mxu0 0.0
    %393 = vmatpush1.msra.mxu0 0.0
    %394 = vmatprep.subr.mxu0 0.0
    %395 = vmatpush1.msra.mxu0 0.0
    %396 = vmatprep.subr.mxu0 0.0
    %397 = vmatpush1.msra.mxu0 0.0
    %398 = vmatprep.mubr.f32.mxu0 0.0
    %399 = vmatmul.mubr.f32.gmra.mrb[0].mxu0 %v329
    %v400 = vpop.f32.mrb[0].mxu0
    %v401 = vadd.f32 0.0, %v400
    %v402 = vpop.f32.mrb[0].mxu0
    %403 = vdwg.mxu0
    %vm404 = vcmask 31744
    %405 = vst.msk [vmem:[%s5] sm:$0xff] %vm404, %v401
    // Predicated region
    $region30: #{dueling_q_forward.1} parent=1 // pred_check
      _
    $region31: #{dueling_q_forward.1} parent=1 // pred_check_branch
      %407 = sbr.rel (0) target = $region33
    $region32: #{dueling_q_forward.1} parent=1 // pred_region
      _
    $region33: #{dueling_q_forward.1} parent=1 // pred_fallthru
      _
    // Predicated region
    $region34: #{dueling_q_forward.1} parent=1 // pred_check
      _
    $region35: #{dueling_q_forward.1} parent=1 // pred_check_branch
      %409 = sbr.rel (0) target = $region37
    $region36: #{dueling_q_forward.1} parent=1 // pred_region
      _
    $region37: #{dueling_q_forward.1} parent=1 // pred_fallthru
      _
    %410 = vsyncpa [#allocation3], 1
    %411 = vsyncpa [#allocation5], 1

</llo_original>
